<compile_context>
chip_gen: v5e
topology: v5e:2x2
jax: 0.10.0
libtpu: 0.0.40
codegen_flags: <defaults>
</compile_context>

<pallas_src>
import functools

import jax
import jax.numpy as jnp
from jax import lax
from jax.experimental import pallas as pl
from jax.experimental.pallas import tpu as pltpu


# ----------------------------------------------------------------------------
# Fused DoubleConv kernel (single invocation, everything resident in VMEM/vregs).
# ----------------------------------------------------------------------------
def double_conv_kernel(x_ref, w1_ref, w2_ref, g1_ref, be1_ref,
                       g2_ref, be2_ref, fold_ref, bcast_ref, o_ref, *, H, W):
    # x_ref    : (N*H, W*Cin)           lane-dense input rows
    # w1_ref   : (3, W*Cin,  W*Cout)    banded conv1 weights (W-padding folded in)
    # w2_ref   : (3, W*Cout, W*Cout)    banded conv2 weights
    # g*/be*   : (1, W*Cout)            BN gamma/beta pre-tiled to lane layout
    # fold_ref : (W*Cout, Cout)         sums the W lane-groups per channel
    # bcast_ref: (Cout, W*Cout)         broadcasts per-channel values back
    # o_ref    : (N*H, W*Cout)
    R, WCout = o_ref.shape
    cnt = float(R * W)                        # elements per channel: N*H*W

    fold = fold_ref[...]
    bcast = bcast_ref[...]

    # Image-boundary row masks (shared by both convs; both outputs are (R, WCout)).
    row = lax.broadcasted_iota(jnp.int32, (R, WCout), 0) % H
    top_ok = row != 0                         # a row above exists in this image
    bot_ok = row != (H - 1)                   # a row below exists in this image

    def conv3x3(lhs, w_ref):
        # lhs: (R, K) lane-dense rows; w_ref: (3, K, WCout) banded weights.
        # One matmul per kernel row; row offsets via XLU sublane rolls + masks
        # (the rolled-in wrap rows are exactly the masked boundary rows).
        y0 = jnp.dot(lhs, w_ref[0], preferred_element_type=jnp.float32)
        y1 = jnp.dot(lhs, w_ref[1], preferred_element_type=jnp.float32)
        y2 = jnp.dot(lhs, w_ref[2], preferred_element_type=jnp.float32)
        up = jnp.where(top_ok, pltpu.roll(y0, 1, 0), 0.0)      # out[r] += y0[r-1]
        dn = jnp.where(bot_ok, pltpu.roll(y2, R - 1, 0), 0.0)  # out[r] += y2[r+1]
        return y1 + up + dn

    def bn_relu(y, gamma_l, beta_l):
        # Training-mode BN: biased batch variance, one pass (sum / sum-of-squares).
        s = jnp.sum(y, axis=0, keepdims=True)                           # (1, WC)
        s2 = jnp.sum(y * y, axis=0, keepdims=True)                      # (1, WC)
        s_c = jnp.dot(s, fold, preferred_element_type=jnp.float32)      # (1, C)
        s2_c = jnp.dot(s2, fold, preferred_element_type=jnp.float32)    # (1, C)
        mean_c = s_c / cnt
        var_c = s2_c / cnt - mean_c * mean_c
        inv_c = lax.rsqrt(var_c + 1e-5)
        mean_l = jnp.dot(mean_c, bcast, preferred_element_type=jnp.float32)
        inv_l = jnp.dot(inv_c, bcast, preferred_element_type=jnp.float32)
        scale = inv_l * gamma_l
        shift = beta_l - mean_l * scale
        return jnp.maximum(y * scale + shift, 0.0)

    x = x_ref[...].astype(jnp.float32)
    # conv biases omitted: exactly cancelled by the BN mean subtraction below.
    h1 = bn_relu(conv3x3(x, w1_ref), g1_ref[...], be1_ref[...])
    out = bn_relu(conv3x3(h1, w2_ref), g2_ref[...], be2_ref[...])
    o_ref[...] = out.astype(o_ref.dtype)


# ----------------------------------------------------------------------------
# Host-side weight preprocessing:
# PyTorch (Cout, Cin, 3, 3) -> (3, W*Cin, W*Cout) block-banded matrices with
#   big[dy, w_in*Cin + ci, w_out*Cout + co] = w[co, ci, dy, w_in - w_out + 1]
# when |w_in - w_out| <= 1, else 0.  This also implements zero padding along W.
# ----------------------------------------------------------------------------
def _banded_conv_weights(w, W):
    Cout, Cin = w.shape[0], w.shape[1]
    w_hwio = jnp.transpose(w, (2, 3, 1, 0)).astype(jnp.float32)   # (dy,dx,ci,co)
    dx = jnp.arange(3)[:, None, None]
    w_in = jnp.arange(W)[None, :, None]
    w_out = jnp.arange(W)[None, None, :]
    mask = (w_in == w_out + dx - 1).astype(jnp.float32)           # (dx,w_in,w_out)
    big = jnp.einsum("xio,yxcd->yicod", mask, w_hwio)             # (dy,w_in,ci,w_out,co)
    return big.reshape(3, W * Cin, W * Cout)


# ----------------------------------------------------------------------------
# DoubleConv forward (NCHW in / NCHW out, matching the PyTorch module).
# ----------------------------------------------------------------------------
@jax.jit
def double_conv_forward(x_nchw, params):
    w1, b1, g1, be1, w2, b2, g2, be2 = params
    del b1, b2   # conv biases cancel exactly under training-mode BatchNorm
    N, Cin, H, W = x_nchw.shape
    Cout = w1.shape[0]
    R = N * H

    # NCHW -> lane-dense (N*H, W*Cin)
    x_flat = jnp.transpose(x_nchw, (0, 2, 3, 1)).reshape(R, W * Cin)

    w1_big = _banded_conv_weights(w1, W)          # (3, W*Cin,  W*Cout)
    w2_big = _banded_conv_weights(w2, W)          # (3, W*Cout, W*Cout)

    # BN affine params pre-tiled to the (1, W*Cout) lane layout (channel = lane % Cout).
    g1_l = jnp.tile(g1.astype(jnp.float32), W).reshape(1, W * Cout)
    be1_l = jnp.tile(be1.astype(jnp.float32), W).reshape(1, W * Cout)
    g2_l = jnp.tile(g2.astype(jnp.float32), W).reshape(1, W * Cout)
    be2_l = jnp.tile(be2.astype(jnp.float32), W).reshape(1, W * Cout)

    # Constant fold/broadcast matrices for the per-channel BN reduction.
    eye = jnp.eye(Cout, dtype=jnp.float32)
    fold = jnp.tile(eye, (W, 1))                  # (W*Cout, Cout)
    bcast = fold.T                                # (Cout, W*Cout)

    vmem = pl.BlockSpec(memory_space=pltpu.MemorySpace.VMEM)
    kernel = functools.partial(double_conv_kernel, H=H, W=W)
    out_flat = pl.pallas_call(
        kernel,
        out_shape=jax.ShapeDtypeStruct((R, W * Cout), x_nchw.dtype),
        in_specs=[vmem] * 9,
        out_specs=vmem,
    )(x_flat, w1_big, w2_big, g1_l, be1_l, g2_l, be2_l, fold, bcast)

    # (N*H, W*Cout) -> NCHW
    return jnp.transpose(out_flat.reshape(N, H, W, Cout), (0, 3, 1, 2))


# ----------------------------------------------------------------------------
# Pure-JAX reference (Conv2d(pad=1) -> training-mode BN -> ReLU, twice).
# ----------------------------------------------------------------------------
@jax.jit
def double_conv_reference(x, params):
    w1, b1, g1, be1, w2, b2, g2, be2 = params

    def conv(z, w, b):
        y = lax.conv_general_dilated(
            z, w, window_strides=(1, 1), padding=((1, 1), (1, 1)),
            dimension_numbers=("NCHW", "OIHW", "NCHW"),
            precision=lax.Precision.HIGHEST)
        return y + b[None, :, None, None]

    def bn_relu(y, g, be):
        mean = jnp.mean(y, axis=(0, 2, 3), keepdims=True)
        var = jnp.mean(jnp.square(y - mean), axis=(0, 2, 3), keepdims=True)
        yn = (y - mean) * lax.rsqrt(var + 1e-5)
        return jnp.maximum(yn * g[None, :, None, None] + be[None, :, None, None], 0.0)

    h = bn_relu(conv(x, w1, b1), g1, be1)
    return bn_relu(conv(h, w2, b2), g2, be2)


if __name__ == "__main__":
    N, Cin, Cout, H, W = 2, 4, 8, 16, 16

    key = jax.random.PRNGKey(0)
    ks = jax.random.split(key, 9)
    x = jax.random.normal(ks[0], (N, Cin, H, W), jnp.float32)

    # Deterministic synthetic parameters (shapes from nn.Conv2d / nn.BatchNorm2d).
    w1 = jax.random.normal(ks[1], (Cout, Cin, 3, 3), jnp.float32) / jnp.sqrt(9.0 * Cin)
    b1 = 0.1 * jax.random.normal(ks[2], (Cout,), jnp.float32)
    g1 = 1.0 + 0.1 * jax.random.normal(ks[3], (Cout,), jnp.float32)
    be1 = 0.1 * jax.random.normal(ks[4], (Cout,), jnp.float32)
    w2 = jax.random.normal(ks[5], (Cout, Cout, 3, 3), jnp.float32) / jnp.sqrt(9.0 * Cout)
    b2 = 0.1 * jax.random.normal(ks[6], (Cout,), jnp.float32)
    g2 = 1.0 + 0.1 * jax.random.normal(ks[7], (Cout,), jnp.float32)
    be2 = 0.1 * jax.random.normal(ks[8], (Cout,), jnp.float32)

    params = (w1, b1, g1, be1, w2, b2, g2, be2)

    out = double_conv_forward(x, params)
    jax.block_until_ready(out)
    assert out.shape == (N, Cout, H, W), out.shape
    assert bool(jnp.all(out >= 0.0))  # ReLU output

    ref = double_conv_reference(x, params)
    err = float(jnp.max(jnp.abs(out - ref)))
    assert err < 2e-3, f"max abs error vs pure-JAX reference: {err}"

    print("KERNEL_OK")
</pallas_src>

<mosaic_0001>
module attributes {stable_mosaic.version = 11 : i64} {
  func.func @double_conv_kernel(%arg0: memref<32x64xf32, #tpu.memory_space<vmem>>, %arg1: memref<3x64x128xf32, #tpu.memory_space<vmem>>, %arg2: memref<3x128x128xf32, #tpu.memory_space<vmem>>, %arg3: memref<1x128xf32, #tpu.memory_space<vmem>>, %arg4: memref<1x128xf32, #tpu.memory_space<vmem>>, %arg5: memref<1x128xf32, #tpu.memory_space<vmem>>, %arg6: memref<1x128xf32, #tpu.memory_space<vmem>>, %arg7: memref<128x8xf32, #tpu.memory_space<vmem>>, %arg8: memref<8x128xf32, #tpu.memory_space<vmem>>, %arg9: memref<32x128xf32, #tpu.memory_space<vmem>>) attributes {dimension_semantics = [], scalar_prefetch = 0 : i64, scratch_operands = 0 : i64, tpu.core_type = #tpu.core_type<tc>} {
    %c0 = arith.constant 0 : index
    %c0_0 = arith.constant 0 : index
    %0 = vector.load %arg7[%c0, %c0_0] : memref<128x8xf32, #tpu.memory_space<vmem>>, vector<128x8xf32>
    %c0_1 = arith.constant 0 : index
    %c0_2 = arith.constant 0 : index
    %1 = vector.load %arg8[%c0_1, %c0_2] : memref<8x128xf32, #tpu.memory_space<vmem>>, vector<8x128xf32>
    %2 = tpu.iota {dimensions = array<i32: 0>} : vector<32x128xi32>
    %c16_i32 = arith.constant 16 : i32
    %c0_i32 = arith.constant 0 : i32
    %3 = arith.cmpi eq, %c16_i32, %c0_i32 : i32
    %c1_i32 = arith.constant 1 : i32
    %4 = arith.select %3, %c1_i32, %c16_i32 : i32
    %5 = vector.broadcast %4 : i32 to vector<32x128xi32>
    %6 = arith.remsi %2, %5 : vector<32x128xi32>
    %c0_i32_3 = arith.constant 0 : i32
    %7 = vector.broadcast %c0_i32_3 : i32 to vector<32x128xi32>
    %8 = arith.cmpi ne, %6, %7 : vector<32x128xi32>
    %c0_i32_4 = arith.constant 0 : i32
    %9 = vector.broadcast %c0_i32_4 : i32 to vector<32x128xi32>
    %10 = arith.cmpi slt, %6, %9 : vector<32x128xi32>
    %c0_i32_5 = arith.constant 0 : i32
    %11 = arith.cmpi slt, %4, %c0_i32_5 : i32
    %12 = vector.broadcast %11 : i1 to vector<32x128xi1>
    %13 = vector.broadcast %12 : vector<32x128xi1> to vector<32x128xi1>
    %14 = arith.xori %10, %13 : vector<32x128xi1>
    %15 = arith.andi %14, %8 : vector<32x128xi1>
    %16 = vector.broadcast %4 : i32 to vector<32x128xi32>
    %17 = arith.addi %6, %16 : vector<32x128xi32>
    %18 = arith.select %15, %17, %6 : vector<32x128xi1>, vector<32x128xi32>
    %c0_i32_6 = arith.constant 0 : i32
    %19 = vector.broadcast %c0_i32_6 : i32 to vector<32x128xi32>
    %20 = arith.cmpi ne, %18, %19 : vector<32x128xi32>
    %c15_i32 = arith.constant 15 : i32
    %21 = vector.broadcast %c15_i32 : i32 to vector<32x128xi32>
    %22 = arith.cmpi ne, %18, %21 : vector<32x128xi32>
    %c0_7 = arith.constant 0 : index
    %c0_8 = arith.constant 0 : index
    %23 = vector.load %arg0[%c0_7, %c0_8] : memref<32x64xf32, #tpu.memory_space<vmem>>, vector<32x64xf32>
    %c0_9 = arith.constant 0 : index
    %c0_10 = arith.constant 0 : index
    %c0_11 = arith.constant 0 : index
    %24 = vector.load %arg1[%c0_9, %c0_10, %c0_11] : memref<3x64x128xf32, #tpu.memory_space<vmem>>, vector<1x64x128xf32>
    %25 = vector.shape_cast %24 : vector<1x64x128xf32> to vector<64x128xf32>
    %cst = arith.constant dense<0.000000e+00> : vector<32x128xf32>
    %26 = tpu.matmul %23, %25, %cst {dimension_numbers = #tpu.dot_dimension_numbers<[1], [0], [0], [1], [0, 0, 1, 1], [], []>} : vector<32x64xf32>, vector<64x128xf32>, vector<32x128xf32> -> vector<32x128xf32>
    %c1 = arith.constant 1 : index
    %c0_12 = arith.constant 0 : index
    %c0_13 = arith.constant 0 : index
    %27 = vector.load %arg1[%c1, %c0_12, %c0_13] : memref<3x64x128xf32, #tpu.memory_space<vmem>>, vector<1x64x128xf32>
    %28 = vector.shape_cast %27 : vector<1x64x128xf32> to vector<64x128xf32>
    %cst_14 = arith.constant dense<0.000000e+00> : vector<32x128xf32>
    %29 = tpu.matmul %23, %28, %cst_14 {dimension_numbers = #tpu.dot_dimension_numbers<[1], [0], [0], [1], [0, 0, 1, 1], [], []>} : vector<32x64xf32>, vector<64x128xf32>, vector<32x128xf32> -> vector<32x128xf32>
    %c2 = arith.constant 2 : index
    %c0_15 = arith.constant 0 : index
    %c0_16 = arith.constant 0 : index
    %30 = vector.load %arg1[%c2, %c0_15, %c0_16] : memref<3x64x128xf32, #tpu.memory_space<vmem>>, vector<1x64x128xf32>
    %31 = vector.shape_cast %30 : vector<1x64x128xf32> to vector<64x128xf32>
    %cst_17 = arith.constant dense<0.000000e+00> : vector<32x128xf32>
    %32 = tpu.matmul %23, %31, %cst_17 {dimension_numbers = #tpu.dot_dimension_numbers<[1], [0], [0], [1], [0, 0, 1, 1], [], []>} : vector<32x64xf32>, vector<64x128xf32>, vector<32x128xf32> -> vector<32x128xf32>
    %c1_i32_18 = arith.constant 1 : i32
    %33 = tpu.dynamic_rotate %26 by %c1_i32_18 dim 0 : vector<32x128xf32>, i32 -> vector<32x128xf32>
    %cst_19 = arith.constant 0.000000e+00 : f32
    %34 = vector.broadcast %cst_19 : f32 to vector<32x128xf32>
    %35 = arith.select %20, %33, %34 : vector<32x128xi1>, vector<32x128xf32>
    %c31_i32 = arith.constant 31 : i32
    %36 = tpu.dynamic_rotate %32 by %c31_i32 dim 0 : vector<32x128xf32>, i32 -> vector<32x128xf32>
    %cst_20 = arith.constant 0.000000e+00 : f32
    %37 = vector.broadcast %cst_20 : f32 to vector<32x128xf32>
    %38 = arith.select %22, %36, %37 : vector<32x128xi1>, vector<32x128xf32>
    %39 = arith.addf %29, %35 : vector<32x128xf32>
    %40 = arith.addf %39, %38 : vector<32x128xf32>
    %c0_21 = arith.constant 0 : index
    %c0_22 = arith.constant 0 : index
    %41 = vector.load %arg3[%c0_21, %c0_22] : memref<1x128xf32, #tpu.memory_space<vmem>>, vector<1x128xf32>
    %c0_23 = arith.constant 0 : index
    %c0_24 = arith.constant 0 : index
    %42 = vector.load %arg4[%c0_23, %c0_24] : memref<1x128xf32, #tpu.memory_space<vmem>>, vector<1x128xf32>
    %cst_25 = arith.constant dense<0.000000e+00> : vector<128xf32>
    %43 = vector.multi_reduction <add>, %40, %cst_25 [0] : vector<32x128xf32> to vector<128xf32>
    %44 = vector.shape_cast %43 : vector<128xf32> to vector<1x128xf32>
    %45 = arith.mulf %40, %40 : vector<32x128xf32>
    %cst_26 = arith.constant dense<0.000000e+00> : vector<128xf32>
    %46 = vector.multi_reduction <add>, %45, %cst_26 [0] : vector<32x128xf32> to vector<128xf32>
    %47 = vector.shape_cast %46 : vector<128xf32> to vector<1x128xf32>
    %cst_27 = arith.constant dense<0.000000e+00> : vector<1x8xf32>
    %48 = tpu.matmul %44, %0, %cst_27 {dimension_numbers = #tpu.dot_dimension_numbers<[1], [0], [0], [1], [0, 0, 1, 1], [], []>} : vector<1x128xf32>, vector<128x8xf32>, vector<1x8xf32> -> vector<1x8xf32>
    %cst_28 = arith.constant dense<0.000000e+00> : vector<1x8xf32>
    %49 = tpu.matmul %47, %0, %cst_28 {dimension_numbers = #tpu.dot_dimension_numbers<[1], [0], [0], [1], [0, 0, 1, 1], [], []>} : vector<1x128xf32>, vector<128x8xf32>, vector<1x8xf32> -> vector<1x8xf32>
    %cst_29 = arith.constant 5.120000e+02 : f32
    %50 = vector.broadcast %cst_29 : f32 to vector<1x8xf32>
    %51 = arith.divf %48, %50 : vector<1x8xf32>
    %cst_30 = arith.constant 5.120000e+02 : f32
    %52 = vector.broadcast %cst_30 : f32 to vector<1x8xf32>
    %53 = arith.divf %49, %52 : vector<1x8xf32>
    %54 = arith.mulf %51, %51 : vector<1x8xf32>
    %55 = arith.subf %53, %54 : vector<1x8xf32>
    %cst_31 = arith.constant 9.99999974E-6 : f32
    %56 = vector.broadcast %cst_31 : f32 to vector<1x8xf32>
    %57 = arith.addf %55, %56 : vector<1x8xf32>
    %58 = math.rsqrt %57 : vector<1x8xf32>
    %cst_32 = arith.constant dense<0.000000e+00> : vector<1x128xf32>
    %59 = tpu.matmul %51, %1, %cst_32 {dimension_numbers = #tpu.dot_dimension_numbers<[1], [0], [0], [1], [0, 0, 1, 1], [], []>} : vector<1x8xf32>, vector<8x128xf32>, vector<1x128xf32> -> vector<1x128xf32>
    %cst_33 = arith.constant dense<0.000000e+00> : vector<1x128xf32>
    %60 = tpu.matmul %58, %1, %cst_33 {dimension_numbers = #tpu.dot_dimension_numbers<[1], [0], [0], [1], [0, 0, 1, 1], [], []>} : vector<1x8xf32>, vector<8x128xf32>, vector<1x128xf32> -> vector<1x128xf32>
    %61 = arith.mulf %60, %41 : vector<1x128xf32>
    %62 = arith.mulf %59, %61 : vector<1x128xf32>
    %63 = arith.subf %42, %62 : vector<1x128xf32>
    %64 = vector.broadcast %61 : vector<1x128xf32> to vector<32x128xf32>
    %65 = arith.mulf %40, %64 : vector<32x128xf32>
    %66 = vector.broadcast %63 : vector<1x128xf32> to vector<32x128xf32>
    %67 = arith.addf %65, %66 : vector<32x128xf32>
    %cst_34 = arith.constant 0.000000e+00 : f32
    %68 = vector.broadcast %cst_34 : f32 to vector<32x128xf32>
    %69 = arith.maximumf %67, %68 : vector<32x128xf32>
    %c0_35 = arith.constant 0 : index
    %c0_36 = arith.constant 0 : index
    %c0_37 = arith.constant 0 : index
    %70 = vector.load %arg2[%c0_35, %c0_36, %c0_37] : memref<3x128x128xf32, #tpu.memory_space<vmem>>, vector<1x128x128xf32>
    %71 = vector.shape_cast %70 : vector<1x128x128xf32> to vector<128x128xf32>
    %cst_38 = arith.constant dense<0.000000e+00> : vector<32x128xf32>
    %72 = tpu.matmul %69, %71, %cst_38 {dimension_numbers = #tpu.dot_dimension_numbers<[1], [0], [0], [1], [0, 0, 1, 1], [], []>} : vector<32x128xf32>, vector<128x128xf32>, vector<32x128xf32> -> vector<32x128xf32>
    %c1_39 = arith.constant 1 : index
    %c0_40 = arith.constant 0 : index
    %c0_41 = arith.constant 0 : index
    %73 = vector.load %arg2[%c1_39, %c0_40, %c0_41] : memref<3x128x128xf32, #tpu.memory_space<vmem>>, vector<1x128x128xf32>
    %74 = vector.shape_cast %73 : vector<1x128x128xf32> to vector<128x128xf32>
    %cst_42 = arith.constant dense<0.000000e+00> : vector<32x128xf32>
    %75 = tpu.matmul %69, %74, %cst_42 {dimension_numbers = #tpu.dot_dimension_numbers<[1], [0], [0], [1], [0, 0, 1, 1], [], []>} : vector<32x128xf32>, vector<128x128xf32>, vector<32x128xf32> -> vector<32x128xf32>
    %c2_43 = arith.constant 2 : index
    %c0_44 = arith.constant 0 : index
    %c0_45 = arith.constant 0 : index
    %76 = vector.load %arg2[%c2_43, %c0_44, %c0_45] : memref<3x128x128xf32, #tpu.memory_space<vmem>>, vector<1x128x128xf32>
    %77 = vector.shape_cast %76 : vector<1x128x128xf32> to vector<128x128xf32>
    %cst_46 = arith.constant dense<0.000000e+00> : vector<32x128xf32>
    %78 = tpu.matmul %69, %77, %cst_46 {dimension_numbers = #tpu.dot_dimension_numbers<[1], [0], [0], [1], [0, 0, 1, 1], [], []>} : vector<32x128xf32>, vector<128x128xf32>, vector<32x128xf32> -> vector<32x128xf32>
    %c1_i32_47 = arith.constant 1 : i32
    %79 = tpu.dynamic_rotate %72 by %c1_i32_47 dim 0 : vector<32x128xf32>, i32 -> vector<32x128xf32>
    %cst_48 = arith.constant 0.000000e+00 : f32
    %80 = vector.broadcast %cst_48 : f32 to vector<32x128xf32>
    %81 = arith.select %20, %79, %80 : vector<32x128xi1>, vector<32x128xf32>
    %c31_i32_49 = arith.constant 31 : i32
    %82 = tpu.dynamic_rotate %78 by %c31_i32_49 dim 0 : vector<32x128xf32>, i32 -> vector<32x128xf32>
    %cst_50 = arith.constant 0.000000e+00 : f32
    %83 = vector.broadcast %cst_50 : f32 to vector<32x128xf32>
    %84 = arith.select %22, %82, %83 : vector<32x128xi1>, vector<32x128xf32>
    %85 = arith.addf %75, %81 : vector<32x128xf32>
    %86 = arith.addf %85, %84 : vector<32x128xf32>
    %c0_51 = arith.constant 0 : index
    %c0_52 = arith.constant 0 : index
    %87 = vector.load %arg5[%c0_51, %c0_52] : memref<1x128xf32, #tpu.memory_space<vmem>>, vector<1x128xf32>
    %c0_53 = arith.constant 0 : index
    %c0_54 = arith.constant 0 : index
    %88 = vector.load %arg6[%c0_53, %c0_54] : memref<1x128xf32, #tpu.memory_space<vmem>>, vector<1x128xf32>
    %cst_55 = arith.constant dense<0.000000e+00> : vector<128xf32>
    %89 = vector.multi_reduction <add>, %86, %cst_55 [0] : vector<32x128xf32> to vector<128xf32>
    %90 = vector.shape_cast %89 : vector<128xf32> to vector<1x128xf32>
    %91 = arith.mulf %86, %86 : vector<32x128xf32>
    %cst_56 = arith.constant dense<0.000000e+00> : vector<128xf32>
    %92 = vector.multi_reduction <add>, %91, %cst_56 [0] : vector<32x128xf32> to vector<128xf32>
    %93 = vector.shape_cast %92 : vector<128xf32> to vector<1x128xf32>
    %cst_57 = arith.constant dense<0.000000e+00> : vector<1x8xf32>
    %94 = tpu.matmul %90, %0, %cst_57 {dimension_numbers = #tpu.dot_dimension_numbers<[1], [0], [0], [1], [0, 0, 1, 1], [], []>} : vector<1x128xf32>, vector<128x8xf32>, vector<1x8xf32> -> vector<1x8xf32>
    %cst_58 = arith.constant dense<0.000000e+00> : vector<1x8xf32>
    %95 = tpu.matmul %93, %0, %cst_58 {dimension_numbers = #tpu.dot_dimension_numbers<[1], [0], [0], [1], [0, 0, 1, 1], [], []>} : vector<1x128xf32>, vector<128x8xf32>, vector<1x8xf32> -> vector<1x8xf32>
    %cst_59 = arith.constant 5.120000e+02 : f32
    %96 = vector.broadcast %cst_59 : f32 to vector<1x8xf32>
    %97 = arith.divf %94, %96 : vector<1x8xf32>
    %cst_60 = arith.constant 5.120000e+02 : f32
    %98 = vector.broadcast %cst_60 : f32 to vector<1x8xf32>
    %99 = arith.divf %95, %98 : vector<1x8xf32>
    %100 = arith.mulf %97, %97 : vector<1x8xf32>
    %101 = arith.subf %99, %100 : vector<1x8xf32>
    %cst_61 = arith.constant 9.99999974E-6 : f32
    %102 = vector.broadcast %cst_61 : f32 to vector<1x8xf32>
    %103 = arith.addf %101, %102 : vector<1x8xf32>
    %104 = math.rsqrt %103 : vector<1x8xf32>
    %cst_62 = arith.constant dense<0.000000e+00> : vector<1x128xf32>
    %105 = tpu.matmul %97, %1, %cst_62 {dimension_numbers = #tpu.dot_dimension_numbers<[1], [0], [0], [1], [0, 0, 1, 1], [], []>} : vector<1x8xf32>, vector<8x128xf32>, vector<1x128xf32> -> vector<1x128xf32>
    %cst_63 = arith.constant dense<0.000000e+00> : vector<1x128xf32>
    %106 = tpu.matmul %104, %1, %cst_63 {dimension_numbers = #tpu.dot_dimension_numbers<[1], [0], [0], [1], [0, 0, 1, 1], [], []>} : vector<1x8xf32>, vector<8x128xf32>, vector<1x128xf32> -> vector<1x128xf32>
    %107 = arith.mulf %106, %87 : vector<1x128xf32>
    %108 = arith.mulf %105, %107 : vector<1x128xf32>
    %109 = arith.subf %88, %108 : vector<1x128xf32>
    %110 = vector.broadcast %107 : vector<1x128xf32> to vector<32x128xf32>
    %111 = arith.mulf %86, %110 : vector<32x128xf32>
    %112 = vector.broadcast %109 : vector<1x128xf32> to vector<32x128xf32>
    %113 = arith.addf %111, %112 : vector<32x128xf32>
    %cst_64 = arith.constant 0.000000e+00 : f32
    %114 = vector.broadcast %cst_64 : f32 to vector<32x128xf32>
    %115 = arith.maximumf %113, %114 : vector<32x128xf32>
    %c0_65 = arith.constant 0 : index
    %c0_66 = arith.constant 0 : index
    %116 = vector.load %arg9[%c0_65, %c0_66] : memref<32x128xf32, #tpu.memory_space<vmem>>, vector<32x128xf32>
    tpu.vector_store %arg9[%c0_65, %c0_66], %115 {strides = array<i32>} : memref<32x128xf32, #tpu.memory_space<vmem>>, vector<32x128xf32>,
    return
  }
}

</mosaic_0001>

<llo_original>
// kernel: tile.49
$region0: #{tile.49}
  %s0 = inlined_call_operand.vmem [shape: f32[16,8,8], index: 0, kind: input, shape index: {}]
  %s1 = inlined_call_operand.vmem [shape: f32[128,8], index: 1, kind: output, shape index: {}]
  %s2 = smov 3
  %v3 = vld [vmem:[%s0] ss:$16 sm:%s2]
  %s4 = smov 12
  %v5 = vld [vmem:[%s0] ss:$16 sm:%s4]
  %vm6 = vcmask 1043458
  %v7 = vsel %vm6, %v5, %v3
  %s8 = smov 48
  %v9 = vld [vmem:[%s0] ss:$16 sm:%s8]
  %vm10 = vcmask 1045508
  %v11 = vsel %vm10, %v9, %v7
  %s12 = smov 192
  %v13 = vld [vmem:[%s0] ss:$16 sm:%s12]
  %vm14 = vcmask 1047558
  %v15 = vsel %vm14, %v13, %v11
  %vm16 = vcmask 64512
  %17 = vst.msk [vmem:[%s1] sm:$0xff] %vm16, %v15
  %s18 = scalar_lea.vmem %s0, 15
  %s19 = smov 3
  %v20 = vld [vmem:[%s18] ss:$16 sm:%s19]
  %s21 = scalar_lea.vmem %s0, 15
  %s22 = smov 12
  %v23 = vld [vmem:[%s21] ss:$16 sm:%s22]
  %vm24 = vcmask 1043458
  %v25 = vsel %vm24, %v23, %v20
  %s26 = scalar_lea.vmem %s0, 15
  %s27 = smov 48
  %v28 = vld [vmem:[%s26] ss:$16 sm:%s27]
  %vm29 = vcmask 1045508
  %v30 = vsel %vm29, %v28, %v25
  %s31 = scalar_lea.vmem %s0, 15
  %s32 = smov 192
  %v33 = vld [vmem:[%s31] ss:$16 sm:%s32]
  %vm34 = vcmask 1047558
  %v35 = vsel %vm34, %v33, %v30
  %36 = vrot.lane.b32.xlu0 %v35, 120
  %v37 = vpop.permute.xlu0 %36
  %vm38 = vcmask 1048512
  %39 = vst.msk [vmem:[%s1] sm:$0xff] %vm38, %v37
  %s40 = scalar_lea.vmem %s0, 14
  %s41 = smov 3
  %v42 = vld [vmem:[%s40] ss:$16 sm:%s41]
  %s43 = scalar_lea.vmem %s0, 14
  %s44 = smov 12
  %v45 = vld [vmem:[%s43] ss:$16 sm:%s44]
  %vm46 = vcmask 1043458
  %v47 = vsel %vm46, %v45, %v42
  %s48 = scalar_lea.vmem %s0, 14
  %s49 = smov 48
  %v50 = vld [vmem:[%s48] ss:$16 sm:%s49]
  %vm51 = vcmask 1045508
  %v52 = vsel %vm51, %v50, %v47
  %s53 = scalar_lea.vmem %s0, 14
  %s54 = smov 192
  %v55 = vld [vmem:[%s53] ss:$16 sm:%s54]
  %vm56 = vcmask 1047558
  %v57 = vsel %vm56, %v55, %v52
  %58 = vrot.lane.b32.xlu0 %v57, 112
  %v59 = vpop.permute.xlu0 %58
  %vm60 = vcmask 982912
  %61 = vst.msk [vmem:[%s1] sm:$0xff] %vm60, %v59
  %s62 = scalar_lea.vmem %s0, 13
  %s63 = smov 3
  %v64 = vld [vmem:[%s62] ss:$16 sm:%s63]
  %s65 = scalar_lea.vmem %s0, 13
  %s66 = smov 12
  %v67 = vld [vmem:[%s65] ss:$16 sm:%s66]
  %vm68 = vcmask 1043458
  %v69 = vsel %vm68, %v67, %v64
  %s70 = scalar_lea.vmem %s0, 13
  %s71 = smov 48
  %v72 = vld [vmem:[%s70] ss:$16 sm:%s71]
  %vm73 = vcmask 1045508
  %v74 = vsel %vm73, %v72, %v69
  %s75 = scalar_lea.vmem %s0, 13
  %s76 = smov 192
  %v77 = vld [vmem:[%s75] ss:$16 sm:%s76]
  %vm78 = vcmask 1047558
  %v79 = vsel %vm78, %v77, %v74
  %80 = vrot.lane.b32.xlu0 %v79, 104
  %v81 = vpop.permute.xlu0 %80
  %vm82 = vcmask 917312
  %83 = vst.msk [vmem:[%s1] sm:$0xff] %vm82, %v81
  %s84 = scalar_lea.vmem %s0, 12
  %s85 = smov 3
  %v86 = vld [vmem:[%s84] ss:$16 sm:%s85]
  %s87 = scalar_lea.vmem %s0, 12
  %s88 = smov 12
  %v89 = vld [vmem:[%s87] ss:$16 sm:%s88]
  %vm90 = vcmask 1043458
  %v91 = vsel %vm90, %v89, %v86
  %s92 = scalar_lea.vmem %s0, 12
  %s93 = smov 48
  %v94 = vld [vmem:[%s92] ss:$16 sm:%s93]
  %vm95 = vcmask 1045508
  %v96 = vsel %vm95, %v94, %v91
  %s97 = scalar_lea.vmem %s0, 12
  %s98 = smov 192
  %v99 = vld [vmem:[%s97] ss:$16 sm:%s98]
  %vm100 = vcmask 1047558
  %v101 = vsel %vm100, %v99, %v96
  %102 = vrot.lane.b32.xlu0 %v101, 96
  %v103 = vpop.permute.xlu0 %102
  %vm104 = vcmask 851712
  %105 = vst.msk [vmem:[%s1] sm:$0xff] %vm104, %v103
  %s106 = scalar_lea.vmem %s0, 11
  %s107 = smov 3
  %v108 = vld [vmem:[%s106] ss:$16 sm:%s107]
  %s109 = scalar_lea.vmem %s0, 11
  %s110 = smov 12
  %v111 = vld [vmem:[%s109] ss:$16 sm:%s110]
  %vm112 = vcmask 1043458
  %v113 = vsel %vm112, %v111, %v108
  %s114 = scalar_lea.vmem %s0, 11
  %s115 = smov 48
  %v116 = vld [vmem:[%s114] ss:$16 sm:%s115]
  %vm117 = vcmask 1045508
  %v118 = vsel %vm117, %v116, %v113
  %s119 = scalar_lea.vmem %s0, 11
  %s120 = smov 192
  %v121 = vld [vmem:[%s119] ss:$16 sm:%s120]
  %vm122 = vcmask 1047558
  %v123 = vsel %vm122, %v121, %v118
  %124 = vrot.lane.b32.xlu0 %v123, 88
  %v125 = vpop.permute.xlu0 %124
  %vm126 = vcmask 786112
  %127 = vst.msk [vmem:[%s1] sm:$0xff] %vm126, %v125
  %s128 = scalar_lea.vmem %s0, 10
  %s129 = smov 3
  %v130 = vld [vmem:[%s128] ss:$16 sm:%s129]
  %s131 = scalar_lea.vmem %s0, 10
  %s132 = smov 12
  %v133 = vld [vmem:[%s131] ss:$16 sm:%s132]
  %vm134 = vcmask 1043458
  %v135 = vsel %vm134, %v133, %v130
  %s136 = scalar_lea.vmem %s0, 10
  %s137 = smov 48
  %v138 = vld [vmem:[%s136] ss:$16 sm:%s137]
  %vm139 = vcmask 1045508
  %v140 = vsel %vm139, %v138, %v135
  %s141 = scalar_lea.vmem %s0, 10
  %s142 = smov 192
  %v143 = vld [vmem:[%s141] ss:$16 sm:%s142]
  %vm144 = vcmask 1047558
  %v145 = vsel %vm144, %v143, %v140
  %146 = vrot.lane.b32.xlu0 %v145, 80
  %v147 = vpop.permute.xlu0 %146
  %vm148 = vcmask 720512
  %149 = vst.msk [vmem:[%s1] sm:$0xff] %vm148, %v147
  %s150 = scalar_lea.vmem %s0, 9
  %s151 = smov 3
  %v152 = vld [vmem:[%s150] ss:$16 sm:%s151]
  %s153 = scalar_lea.vmem %s0, 9
  %s154 = smov 12
  %v155 = vld [vmem:[%s153] ss:$16 sm:%s154]
  %vm156 = vcmask 1043458
  %v157 = vsel %vm156, %v155, %v152
  %s158 = scalar_lea.vmem %s0, 9
  %s159 = smov 48
  %v160 = vld [vmem:[%s158] ss:$16 sm:%s159]
  %vm161 = vcmask 1045508
  %v162 = vsel %vm161, %v160, %v157
  %s163 = scalar_lea.vmem %s0, 9
  %s164 = smov 192
  %v165 = vld [vmem:[%s163] ss:$16 sm:%s164]
  %vm166 = vcmask 1047558
  %v167 = vsel %vm166, %v165, %v162
  %168 = vrot.lane.b32.xlu0 %v167, 72
  %v169 = vpop.permute.xlu0 %168
  %vm170 = vcmask 654912
  %171 = vst.msk [vmem:[%s1] sm:$0xff] %vm170, %v169
  %s172 = scalar_lea.vmem %s0, 8
  %s173 = smov 3
  %v174 = vld [vmem:[%s172] ss:$16 sm:%s173]
  %s175 = scalar_lea.vmem %s0, 8
  %s176 = smov 12
  %v177 = vld [vmem:[%s175] ss:$16 sm:%s176]
  %vm178 = vcmask 1043458
  %v179 = vsel %vm178, %v177, %v174
  %s180 = scalar_lea.vmem %s0, 8
  %s181 = smov 48
  %v182 = vld [vmem:[%s180] ss:$16 sm:%s181]
  %vm183 = vcmask 1045508
  %v184 = vsel %vm183, %v182, %v179
  %s185 = scalar_lea.vmem %s0, 8
  %s186 = smov 192
  %v187 = vld [vmem:[%s185] ss:$16 sm:%s186]
  %vm188 = vcmask 1047558
  %v189 = vsel %vm188, %v187, %v184
  %190 = vrot.lane.b32.xlu0 %v189, 64
  %v191 = vpop.permute.xlu0 %190
  %vm192 = vcmask 589312
  %193 = vst.msk [vmem:[%s1] sm:$0xff] %vm192, %v191
  %s194 = scalar_lea.vmem %s0, 7
  %s195 = smov 3
  %v196 = vld [vmem:[%s194] ss:$16 sm:%s195]
  %s197 = scalar_lea.vmem %s0, 7
  %s198 = smov 12
  %v199 = vld [vmem:[%s197] ss:$16 sm:%s198]
  %vm200 = vcmask 1043458
  %v201 = vsel %vm200, %v199, %v196
  %s202 = scalar_lea.vmem %s0, 7
  %s203 = smov 48
  %v204 = vld [vmem:[%s202] ss:$16 sm:%s203]
  %vm205 = vcmask 1045508
  %v206 = vsel %vm205, %v204, %v201
  %s207 = scalar_lea.vmem %s0, 7
  %s208 = smov 192
  %v209 = vld [vmem:[%s207] ss:$16 sm:%s208]
  %vm210 = vcmask 1047558
  %v211 = vsel %vm210, %v209, %v206
  %212 = vrot.lane.b32.xlu0 %v211, 56
  %v213 = vpop.permute.xlu0 %212
  %vm214 = vcmask 523712
  %215 = vst.msk [vmem:[%s1] sm:$0xff] %vm214, %v213
  %s216 = scalar_lea.vmem %s0, 6
  %s217 = smov 3
  %v218 = vld [vmem:[%s216] ss:$16 sm:%s217]
  %s219 = scalar_lea.vmem %s0, 6
  %s220 = smov 12
  %v221 = vld [vmem:[%s219] ss:$16 sm:%s220]
  %vm222 = vcmask 1043458
  %v223 = vsel %vm222, %v221, %v218
  %s224 = scalar_lea.vmem %s0, 6
  %s225 = smov 48
  %v226 = vld [vmem:[%s224] ss:$16 sm:%s225]
  %vm227 = vcmask 1045508
  %v228 = vsel %vm227, %v226, %v223
  %s229 = scalar_lea.vmem %s0, 6
  %s230 = smov 192
  %v231 = vld [vmem:[%s229] ss:$16 sm:%s230]
  %vm232 = vcmask 1047558
  %v233 = vsel %vm232, %v231, %v228
  %234 = vrot.lane.b32.xlu0 %v233, 48
  %v235 = vpop.permute.xlu0 %234
  %vm236 = vcmask 458112
  %237 = vst.msk [vmem:[%s1] sm:$0xff] %vm236, %v235
  %s238 = scalar_lea.vmem %s0, 5
  %s239 = smov 3
  %v240 = vld [vmem:[%s238] ss:$16 sm:%s239]
  %s241 = scalar_lea.vmem %s0, 5
  %s242 = smov 12
  %v243 = vld [vmem:[%s241] ss:$16 sm:%s242]
  %vm244 = vcmask 1043458
  %v245 = vsel %vm244, %v243, %v240
  %s246 = scalar_lea.vmem %s0, 5
  %s247 = smov 48
  %v248 = vld [vmem:[%s246] ss:$16 sm:%s247]
  %vm249 = vcmask 1045508
  %v250 = vsel %vm249, %v248, %v245
  %s251 = scalar_lea.vmem %s0, 5
  %s252 = smov 192
  %v253 = vld [vmem:[%s251] ss:$16 sm:%s252]
  %vm254 = vcmask 1047558
  %v255 = vsel %vm254, %v253, %v250
  %256 = vrot.lane.b32.xlu0 %v255, 40
  %v257 = vpop.permute.xlu0 %256
  %vm258 = vcmask 392512
  %259 = vst.msk [vmem:[%s1] sm:$0xff] %vm258, %v257
  %s260 = scalar_lea.vmem %s0, 4
  %s261 = smov 3
  %v262 = vld [vmem:[%s260] ss:$16 sm:%s261]
  %s263 = scalar_lea.vmem %s0, 4
  %s264 = smov 12
  %v265 = vld [vmem:[%s263] ss:$16 sm:%s264]
  %vm266 = vcmask 1043458
  %v267 = vsel %vm266, %v265, %v262
  %s268 = scalar_lea.vmem %s0, 4
  %s269 = smov 48
  %v270 = vld [vmem:[%s268] ss:$16 sm:%s269]
  %vm271 = vcmask 1045508
  %v272 = vsel %vm271, %v270, %v267
  %s273 = scalar_lea.vmem %s0, 4
  %s274 = smov 192
  %v275 = vld [vmem:[%s273] ss:$16 sm:%s274]
  %vm276 = vcmask 1047558
  %v277 = vsel %vm276, %v275, %v272
  %278 = vrot.lane.b32.xlu0 %v277, 32
  %v279 = vpop.permute.xlu0 %278
  %vm280 = vcmask 326912
  %281 = vst.msk [vmem:[%s1] sm:$0xff] %vm280, %v279
  %s282 = scalar_lea.vmem %s0, 3
  %s283 = smov 3
  %v284 = vld [vmem:[%s282] ss:$16 sm:%s283]
  %s285 = scalar_lea.vmem %s0, 3
  %s286 = smov 12
  %v287 = vld [vmem:[%s285] ss:$16 sm:%s286]
  %vm288 = vcmask 1043458
  %v289 = vsel %vm288, %v287, %v284
  %s290 = scalar_lea.vmem %s0, 3
  %s291 = smov 48
  %v292 = vld [vmem:[%s290] ss:$16 sm:%s291]
  %vm293 = vcmask 1045508
  %v294 = vsel %vm293, %v292, %v289
  %s295 = scalar_lea.vmem %s0, 3
  %s296 = smov 192
  %v297 = vld [vmem:[%s295] ss:$16 sm:%s296]
  %vm298 = vcmask 1047558
  %v299 = vsel %vm298, %v297, %v294
  %300 = vrot.lane.b32.xlu0 %v299, 24
  %v301 = vpop.permute.xlu0 %300
  %vm302 = vcmask 261312
  %303 = vst.msk [vmem:[%s1] sm:$0xff] %vm302, %v301
  %s304 = scalar_lea.vmem %s0, 2
  %s305 = smov 3
  %v306 = vld [vmem:[%s304] ss:$16 sm:%s305]
  %s307 = scalar_lea.vmem %s0, 2
  %s308 = smov 12
  %v309 = vld [vmem:[%s307] ss:$16 sm:%s308]
  %vm310 = vcmask 1043458
  %v311 = vsel %vm310, %v309, %v306
  %s312 = scalar_lea.vmem %s0, 2
  %s313 = smov 48
  %v314 = vld [vmem:[%s312] ss:$16 sm:%s313]
  %vm315 = vcmask 1045508
  %v316 = vsel %vm315, %v314, %v311
  %s317 = scalar_lea.vmem %s0, 2
  %s318 = smov 192
  %v319 = vld [vmem:[%s317] ss:$16 sm:%s318]
  %vm320 = vcmask 1047558
  %v321 = vsel %vm320, %v319, %v316
  %322 = vrot.lane.b32.xlu0 %v321, 16
  %v323 = vpop.permute.xlu0 %322
  %vm324 = vcmask 195712
  %325 = vst.msk [vmem:[%s1] sm:$0xff] %vm324, %v323
  %s326 = scalar_lea.vmem %s0, 1
  %s327 = smov 3
  %v328 = vld [vmem:[%s326] ss:$16 sm:%s327]
  %s329 = scalar_lea.vmem %s0, 1
  %s330 = smov 12
  %v331 = vld [vmem:[%s329] ss:$16 sm:%s330]
  %vm332 = vcmask 1043458
  %v333 = vsel %vm332, %v331, %v328
  %s334 = scalar_lea.vmem %s0, 1
  %s335 = smov 48
  %v336 = vld [vmem:[%s334] ss:$16 sm:%s335]
  %vm337 = vcmask 1045508
  %v338 = vsel %vm337, %v336, %v333
  %s339 = scalar_lea.vmem %s0, 1
  %s340 = smov 192
  %v341 = vld [vmem:[%s339] ss:$16 sm:%s340]
  %vm342 = vcmask 1047558
  %v343 = vsel %vm342, %v341, %v338
  %344 = vrot.lane.b32.xlu0 %v343, 8
  %v345 = vpop.permute.xlu0 %344
  %vm346 = vcmask 130112
  %347 = vst.msk [vmem:[%s1] sm:$0xff] %vm346, %v345

// kernel: tile.28
$region0: #{tile.28}
  #allocation0 [shape = 's32[1]{0}', space=sflag, size = 0x4, scoped, tag = 'scoped memory for tile.28']
  %s0 = inlined_call_operand.vmem [shape: f32[8], index: 0, kind: input, shape index: {}]
  %s1 = inlined_call_operand.vmem [shape: f32[16,8], index: 1, kind: output, shape index: {}]
  // Predicated region
  $region2: #{tile.28} parent=0 // pred_check
    _
  $region3: #{tile.28} parent=0 // pred_check_branch
    %3 = sbr.rel (0) target = $region5
  $region4: #{tile.28} parent=0 // pred_region
    _
  $region5: #{tile.28} parent=0 // pred_fallthru
    _
  %v4 = vld [vmem:[%s0] ss:$0 sm:$0xff]
  %5 = vst [vmem:[%s1] sm:$0xff] %v4
  %s6 = scalar_lea.vmem %s1, 8
  %7 = vst [vmem:[%s6] sm:$0xff] %v4

// kernel: tile.29
$region0: #{tile.29}
  %s0 = inlined_call_operand.vmem [shape: f32[16,8], index: 0, kind: input, shape index: {}]
  %s1 = inlined_call_operand.vmem [shape: f32[1,128], index: 1, kind: output, shape index: {}]
  $region1: #{tile.29} parent=0
    #allocation0 [shape = 'u8[4096]{0}', space=vmem, size = 0x1000, scoped, tag = 'scoped mem for output reshape']
    %v2 = vld [vmem:[%s0] sm:$0x1]
    %vm3 = vcmask 64512
    %4 = vst.msk [vmem:[#allocation0] sm:$0x1] %vm3, %v2
    %s5 = scalar_lea.vmem %s0, 15
    %v6 = vld [vmem:[%s5] sm:$0x1]
    %7 = vrot.lane.b32.xlu0 %v6, 120
    %v8 = vpop.permute.xlu0 %7
    %vm9 = vcmask 1048512
    %10 = vst.msk [vmem:[#allocation0] sm:$0x1] %vm9, %v8
    %s11 = scalar_lea.vmem %s0, 14
    %v12 = vld [vmem:[%s11] sm:$0x1]
    %13 = vrot.lane.b32.xlu0 %v12, 112
    %v14 = vpop.permute.xlu0 %13
    %vm15 = vcmask 982912
    %16 = vst.msk [vmem:[#allocation0] sm:$0x1] %vm15, %v14
    %s17 = scalar_lea.vmem %s0, 13
    %v18 = vld [vmem:[%s17] sm:$0x1]
    %19 = vrot.lane.b32.xlu0 %v18, 104
    %v20 = vpop.permute.xlu0 %19
    %vm21 = vcmask 917312
    %22 = vst.msk [vmem:[#allocation0] sm:$0x1] %vm21, %v20
    %s23 = scalar_lea.vmem %s0, 12
    %v24 = vld [vmem:[%s23] sm:$0x1]
    %25 = vrot.lane.b32.xlu0 %v24, 96
    %v26 = vpop.permute.xlu0 %25
    %vm27 = vcmask 851712
    %28 = vst.msk [vmem:[#allocation0] sm:$0x1] %vm27, %v26
    %s29 = scalar_lea.vmem %s0, 11
    %v30 = vld [vmem:[%s29] sm:$0x1]
    %31 = vrot.lane.b32.xlu0 %v30, 88
    %v32 = vpop.permute.xlu0 %31
    %vm33 = vcmask 786112
    %34 = vst.msk [vmem:[#allocation0] sm:$0x1] %vm33, %v32
    %s35 = scalar_lea.vmem %s0, 10
    %v36 = vld [vmem:[%s35] sm:$0x1]
    %37 = vrot.lane.b32.xlu0 %v36, 80
    %v38 = vpop.permute.xlu0 %37
    %vm39 = vcmask 720512
    %40 = vst.msk [vmem:[#allocation0] sm:$0x1] %vm39, %v38
    %s41 = scalar_lea.vmem %s0, 9
    %v42 = vld [vmem:[%s41] sm:$0x1]
    %43 = vrot.lane.b32.xlu0 %v42, 72
    %v44 = vpop.permute.xlu0 %43
    %vm45 = vcmask 654912
    %46 = vst.msk [vmem:[#allocation0] sm:$0x1] %vm45, %v44
    %s47 = scalar_lea.vmem %s0, 8
    %v48 = vld [vmem:[%s47] sm:$0x1]
    %49 = vrot.lane.b32.xlu0 %v48, 64
    %v50 = vpop.permute.xlu0 %49
    %vm51 = vcmask 589312
    %52 = vst.msk [vmem:[#allocation0] sm:$0x1] %vm51, %v50
    %s53 = scalar_lea.vmem %s0, 7
    %v54 = vld [vmem:[%s53] sm:$0x1]
    %55 = vrot.lane.b32.xlu0 %v54, 56
    %v56 = vpop.permute.xlu0 %55
    %vm57 = vcmask 523712
    %58 = vst.msk [vmem:[#allocation0] sm:$0x1] %vm57, %v56
    %s59 = scalar_lea.vmem %s0, 6
    %v60 = vld [vmem:[%s59] sm:$0x1]
    %61 = vrot.lane.b32.xlu0 %v60, 48
    %v62 = vpop.permute.xlu0 %61
    %vm63 = vcmask 458112
    %64 = vst.msk [vmem:[#allocation0] sm:$0x1] %vm63, %v62
    %s65 = scalar_lea.vmem %s0, 5
    %v66 = vld [vmem:[%s65] sm:$0x1]
    %67 = vrot.lane.b32.xlu0 %v66, 40
    %v68 = vpop.permute.xlu0 %67
    %vm69 = vcmask 392512
    %70 = vst.msk [vmem:[#allocation0] sm:$0x1] %vm69, %v68
    %s71 = scalar_lea.vmem %s0, 4
    %v72 = vld [vmem:[%s71] sm:$0x1]
    %73 = vrot.lane.b32.xlu0 %v72, 32
    %v74 = vpop.permute.xlu0 %73
    %vm75 = vcmask 326912
    %76 = vst.msk [vmem:[#allocation0] sm:$0x1] %vm75, %v74
    %s77 = scalar_lea.vmem %s0, 3
    %v78 = vld [vmem:[%s77] sm:$0x1]
    %79 = vrot.lane.b32.xlu0 %v78, 24
    %v80 = vpop.permute.xlu0 %79
    %vm81 = vcmask 261312
    %82 = vst.msk [vmem:[#allocation0] sm:$0x1] %vm81, %v80
    %s83 = scalar_lea.vmem %s0, 2
    %v84 = vld [vmem:[%s83] sm:$0x1]
    %85 = vrot.lane.b32.xlu0 %v84, 16
    %v86 = vpop.permute.xlu0 %85
    %vm87 = vcmask 195712
    %88 = vst.msk [vmem:[#allocation0] sm:$0x1] %vm87, %v86
    %s89 = scalar_lea.vmem %s0, 1
    %v90 = vld [vmem:[%s89] sm:$0x1]
    %91 = vrot.lane.b32.xlu0 %v90, 8
    %v92 = vpop.permute.xlu0 %91
    %vm93 = vcmask 130112
    %94 = vst.msk [vmem:[#allocation0] sm:$0x1] %vm93, %v92
    %s96 = ssub.s32 2, 1
    %v97 = vld [vmem:[#allocation0] sm:%s96]
    %s99 = ssub.s32 2, 1
    %100 = vst [vmem:[%s1] sm:%s99] %v97

// kernel: double_conv_forward.1
$region0: #{double_conv_forward.1}
  #allocation0 [shape = 'u32[]', space=smem, size = 0x4, offset = 0x4, fixed_abs, tag = 'smem constant byte address 0x4 - core index']
  #allocation1 [shape = 'u32[72,128]{1,0:T(1,128)}', space=vmem, size = 0x9000, scoped, tag = 'internal scratch']
  %s0 = inlined_call_operand.vmem [shape: f32[32,64], index: 0, kind: input, shape index: {}]
  %s1 = inlined_call_operand.vmem [shape: f32[3,64,128], index: 1, kind: input, shape index: {}]
  %s2 = inlined_call_operand.vmem [shape: f32[3,128,128], index: 2, kind: input, shape index: {}]
  %s3 = inlined_call_operand.vmem [shape: f32[1,128], index: 3, kind: input, shape index: {}]
  %s4 = inlined_call_operand.vmem [shape: f32[1,128], index: 4, kind: input, shape index: {}]
  %s5 = inlined_call_operand.vmem [shape: f32[1,128], index: 5, kind: input, shape index: {}]
  %s6 = inlined_call_operand.vmem [shape: f32[1,128], index: 6, kind: input, shape index: {}]
  %s7 = inlined_call_operand.vmem [shape: f32[128,8], index: 7, kind: input, shape index: {}]
  %s8 = inlined_call_operand.vmem [shape: f32[8,128], index: 8, kind: input, shape index: {}]
  %s9 = inlined_call_operand.vmem [shape: f32[32,128], index: 9, kind: output, shape index: {}]
  %s10 = sld [smem:[#allocation0]]
  $region46: #{double_conv_forward.1} parent=0
    _
  %s12 = ssub.s32 1, %s10
  %s13 = scalar_select 0, %s12, %s10
  // Predicated region
  $region2: #{double_conv_forward.1} parent=0 // pred_check
    _
  $region3: #{double_conv_forward.1} parent=0 // pred_check_branch
    %15 = sbr.rel (0) target = $region5
  $region4: #{double_conv_forward.1} parent=0 // pred_region
    _
  $region5: #{double_conv_forward.1} parent=0 // pred_fallthru
    _
  // Predicated region
  $region6: #{double_conv_forward.1} parent=0 // pred_check
    _
  $region7: #{double_conv_forward.1} parent=0 // pred_check_branch
    %17 = sbr.rel (0) target = $region9
  $region8: #{double_conv_forward.1} parent=0 // pred_region
    _
  $region9: #{double_conv_forward.1} parent=0 // pred_fallthru
    _
  // Predicated region
  $region10: #{double_conv_forward.1} parent=0 // pred_check
    _
  $region11: #{double_conv_forward.1} parent=0 // pred_check_branch
    %19 = sbr.rel (0) target = $region13
  $region12: #{double_conv_forward.1} parent=0 // pred_region
    _
  $region13: #{double_conv_forward.1} parent=0 // pred_fallthru
    _
  // Predicated region
  $region14: #{double_conv_forward.1} parent=0 // pred_check
    _
  $region15: #{double_conv_forward.1} parent=0 // pred_check_branch
    %21 = sbr.rel (0) target = $region17
  $region16: #{double_conv_forward.1} parent=0 // pred_region
    _
  $region17: #{double_conv_forward.1} parent=0 // pred_fallthru
    _
  // Predicated region
  $region18: #{double_conv_forward.1} parent=0 // pred_check
    _
  $region19: #{double_conv_forward.1} parent=0 // pred_check_branch
    %23 = sbr.rel (0) target = $region21
  $region20: #{double_conv_forward.1} parent=0 // pred_region
    _
  $region21: #{double_conv_forward.1} parent=0 // pred_fallthru
    _
  // Predicated region
  $region22: #{double_conv_forward.1} parent=0 // pred_check
    _
  $region23: #{double_conv_forward.1} parent=0 // pred_check_branch
    %25 = sbr.rel (0) target = $region25
  $region24: #{double_conv_forward.1} parent=0 // pred_region
    _
  $region25: #{double_conv_forward.1} parent=0 // pred_fallthru
    _
  // Predicated region
  $region26: #{double_conv_forward.1} parent=0 // pred_check
    _
  $region27: #{double_conv_forward.1} parent=0 // pred_check_branch
    %27 = sbr.rel (0) target = $region29
  $region28: #{double_conv_forward.1} parent=0 // pred_region
    _
  $region29: #{double_conv_forward.1} parent=0 // pred_fallthru
    _
  // Predicated region
  $region30: #{double_conv_forward.1} parent=0 // pred_check
    _
  $region31: #{double_conv_forward.1} parent=0 // pred_check_branch
    %29 = sbr.rel (0) target = $region33
  $region32: #{double_conv_forward.1} parent=0 // pred_region
    _
  $region33: #{double_conv_forward.1} parent=0 // pred_fallthru
    _
  // Predicated region
  $region34: #{double_conv_forward.1} parent=0 // pred_check
    _
  $region35: #{double_conv_forward.1} parent=0 // pred_check_branch
    %31 = sbr.rel (0) target = $region37
  $region36: #{double_conv_forward.1} parent=0 // pred_region
    _
  $region37: #{double_conv_forward.1} parent=0 // pred_fallthru
    _
  %v32 = vld [vmem:[%s7] sm:$0xff]
  %v33 = vld [vmem:[%s7 + $0x8] sm:$0xff]
  %v34 = vld [vmem:[%s7 + $0x10] sm:$0xff]
  %v35 = vld [vmem:[%s7 + $0x18] sm:$0xff]
  %v36 = vld [vmem:[%s7 + $0x20] sm:$0xff]
  %v37 = vld [vmem:[%s7 + $0x28] sm:$0xff]
  %v38 = vld [vmem:[%s7 + $0x30] sm:$0xff]
  %v39 = vld [vmem:[%s7 + $0x38] sm:$0xff]
  %v40 = vld [vmem:[%s7 + $0x40] sm:$0xff]
  %v41 = vld [vmem:[%s7 + $0x48] sm:$0xff]
  %v42 = vld [vmem:[%s7 + $0x50] sm:$0xff]
  %v43 = vld [vmem:[%s7 + $0x58] sm:$0xff]
  %v44 = vld [vmem:[%s7 + $0x60] sm:$0xff]
  %v45 = vld [vmem:[%s7 + $0x68] sm:$0xff]
  %v46 = vld [vmem:[%s7 + $0x70] sm:$0xff]
  %v47 = vld [vmem:[%s7 + $0x78] sm:$0xff]
  %v48 = vld [vmem:[%s8] sm:$0xff]
  %v49 = vlaneseq
  %v50 = vshrl.u32 %v49, 7
  %v51 = vadd.s32 %v50, 8
  %v52 = vadd.s32 %v50, 16
  %v53 = vadd.s32 %v50, 24
  %vm54 = vcmp.lt.s32.totalorder %v50, 0
  %v55 = vsub.s32 0, %v50
  %v56 = vsel %vm54, %v55, %v50
  %v57 = vshrl.u32 %v56, 4
  %v58 = vand.u32 %v56, 15
  %v59 = vsub.s32 0, %v58
  %v60 = vsel %vm54, %v59, %v58
  %vm61 = vcmp.lt.s32.totalorder %v51, 0
  %v62 = vsub.s32 0, %v51
  %v63 = vsel %vm61, %v62, %v51
  %v64 = vshrl.u32 %v63, 4
  %v65 = vand.u32 %v63, 15
  %v66 = vsub.s32 0, %v65
  %v67 = vsel %vm61, %v66, %v65
  %vm68 = vcmp.lt.s32.totalorder %v52, 0
  %v69 = vsub.s32 0, %v52
  %v70 = vsel %vm68, %v69, %v52
  %v71 = vshrl.u32 %v70, 4
  %v72 = vand.u32 %v70, 15
  %v73 = vsub.s32 0, %v72
  %v74 = vsel %vm68, %v73, %v72
  %vm75 = vcmp.lt.s32.totalorder %v53, 0
  %v76 = vsub.s32 0, %v53
  %v77 = vsel %vm75, %v76, %v53
  %v78 = vshrl.u32 %v77, 4
  %v79 = vand.u32 %v77, 15
  %v80 = vsub.s32 0, %v79
  %v81 = vsel %vm75, %v80, %v79
  %vm82 = vcmp.ne.s32.totalorder %v60, 0
  %vm83 = vcmp.ne.s32.totalorder %v67, 0
  %vm84 = vcmp.ne.s32.totalorder %v74, 0
  %vm85 = vcmp.ne.s32.totalorder %v81, 0
  %vm86 = vcmp.lt.s32.totalorder %v60, 0
  %vm87 = vcmp.lt.s32.totalorder %v67, 0
  %vm88 = vcmp.lt.s32.totalorder %v74, 0
  %vm89 = vcmp.lt.s32.totalorder %v81, 0
  %vm90 = vmand %vm86, %vm82
  %vm91 = vmand %vm87, %vm83
  %vm92 = vmand %vm88, %vm84
  %vm93 = vmand %vm89, %vm85
  %v94 = vadd.s32 %v60, 16
  %v95 = vadd.s32 %v67, 16
  %v96 = vadd.s32 %v74, 16
  %v97 = vadd.s32 %v81, 16
  %v98 = vsel %vm90, %v94, %v60
  %v99 = vsel %vm91, %v95, %v67
  %v100 = vsel %vm92, %v96, %v74
  %v101 = vsel %vm93, %v97, %v81
  %vm102 = vcmp.ne.s32.totalorder %v98, 0
  %vm103 = vcmp.ne.s32.totalorder %v99, 0
  %vm104 = vcmp.ne.s32.totalorder %v100, 0
  %vm105 = vcmp.ne.s32.totalorder %v101, 0
  %vm106 = vcmp.ne.s32.totalorder %v98, 15
  %vm107 = vcmp.ne.s32.totalorder %v99, 15
  %vm108 = vcmp.ne.s32.totalorder %v100, 15
  %vm109 = vcmp.ne.s32.totalorder %v101, 15
  %v110 = vld [vmem:[%s0] sm:$0xff]
  %v111 = vld [vmem:[%s0 + $0x8] sm:$0xff]
  %v112 = vld [vmem:[%s0 + $0x10] sm:$0xff]
  %v113 = vld [vmem:[%s0 + $0x18] sm:$0xff]
  %v114 = vld [vmem:[%s1] sm:$0xff]
  %v115 = vld [vmem:[%s1 + $0x8] sm:$0xff]
  %v116 = vld [vmem:[%s1 + $0x10] sm:$0xff]
  %v117 = vld [vmem:[%s1 + $0x18] sm:$0xff]
  %v118 = vld [vmem:[%s1 + $0x20] sm:$0xff]
  %v119 = vld [vmem:[%s1 + $0x28] sm:$0xff]
  %v120 = vld [vmem:[%s1 + $0x30] sm:$0xff]
  %v121 = vld [vmem:[%s1 + $0x38] sm:$0xff]
  %vm122 = vcmask 523264
  %v124 = vsel %vm122, %v110, 0
  %v127 = vsel %vm122, %v111, 0
  %v130 = vsel %vm122, %v112, 0
  %v133 = vsel %vm122, %v113, 0
  %135 = vmatpush.msra.mxu0 0.0
  %136 = vmatpush.msra.mxu0 0.0
  %137 = vmatpush.msra.mxu0 0.0
  %138 = vmatpush.msra.mxu0 0.0
  %139 = vmatpush.msra.mxu0 0.0
  %140 = vmatpush.msra.mxu0 0.0
  %141 = vmatpush.msra.mxu0 0.0
  %142 = vmatpush.msra.mxu0 0.0
  %143 = vmatpush.msra.mxu0 %v121
  %144 = vmatpush.msra.mxu0 %v120
  %145 = vmatpush.msra.mxu0 %v119
  %146 = vmatpush.msra.mxu0 %v118
  %147 = vmatpush.msra.mxu0 %v117
  %148 = vmatpush.msra.mxu0 %v116
  %149 = vmatpush.msra.mxu0 %v115
  %150 = vmatpush.msra.mxu0 %v114
  %151 = vmatmul.f32.gmra.mxu0 %v124
  %v152 = vpop.f32.mrf.mxu0
  %v153 = vadd.f32 0.0, %v152
  %154 = vmatmul.f32.gmra.mxu0 %v127
  %v155 = vpop.f32.mrf.mxu0
  %v156 = vadd.f32 0.0, %v155
  %157 = vmatmul.f32.gmra.mxu0 %v130
  %v158 = vpop.f32.mrf.mxu0
  %v159 = vadd.f32 0.0, %v158
  %160 = vmatmul.f32.gmra.mxu0 %v133
  %v161 = vpop.f32.mrf.mxu0
  %v162 = vadd.f32 0.0, %v161
  %163 = vdwg.mxu0
  %s164 = scalar_lea.vmem %s1, 64
  %v165 = vld [vmem:[%s164] sm:$0xff]
  %v166 = vld [vmem:[%s164 + $0x8] sm:$0xff]
  %v167 = vld [vmem:[%s164 + $0x10] sm:$0xff]
  %v168 = vld [vmem:[%s164 + $0x18] sm:$0xff]
  %v169 = vld [vmem:[%s164 + $0x20] sm:$0xff]
  %v170 = vld [vmem:[%s164 + $0x28] sm:$0xff]
  %v171 = vld [vmem:[%s164 + $0x30] sm:$0xff]
  %v172 = vld [vmem:[%s164 + $0x38] sm:$0xff]
  %s173 = scalar_lea.vmem %s1, 128
  %v174 = vld [vmem:[%s173] sm:$0xff]
  %v175 = vld [vmem:[%s173 + $0x8] sm:$0xff]
  %v176 = vld [vmem:[%s173 + $0x10] sm:$0xff]
  %v177 = vld [vmem:[%s173 + $0x18] sm:$0xff]
  %v178 = vld [vmem:[%s173 + $0x20] sm:$0xff]
  %v179 = vld [vmem:[%s173 + $0x28] sm:$0xff]
  %v180 = vld [vmem:[%s173 + $0x30] sm:$0xff]
  %v181 = vld [vmem:[%s173 + $0x38] sm:$0xff]
  %182 = vmatpush.msra.mxu0 0.0
  %183 = vmatpush.msra.mxu0 0.0
  %184 = vmatpush.msra.mxu0 0.0
  %185 = vmatpush.msra.mxu0 0.0
  %186 = vmatpush.msra.mxu0 0.0
  %187 = vmatpush.msra.mxu0 0.0
  %188 = vmatpush.msra.mxu0 0.0
  %189 = vmatpush.msra.mxu0 0.0
  %190 = vmatpush.msra.mxu0 %v181
  %191 = vmatpush.msra.mxu0 %v180
  %192 = vmatpush.msra.mxu0 %v179
  %193 = vmatpush.msra.mxu0 %v178
  %194 = vmatpush.msra.mxu0 %v177
  %195 = vmatpush.msra.mxu0 %v176
  %196 = vmatpush.msra.mxu0 %v175
  %197 = vmatpush.msra.mxu0 %v174
  %198 = vmatmul.f32.gmra.mxu0 %v124
  %v199 = vpop.f32.mrf.mxu0
  %v200 = vadd.f32 0.0, %v199
  %201 = vmatmul.f32.gmra.mxu0 %v127
  %v202 = vpop.f32.mrf.mxu0
  %v203 = vadd.f32 0.0, %v202
  %204 = vmatmul.f32.gmra.mxu0 %v130
  %v205 = vpop.f32.mrf.mxu0
  %v206 = vadd.f32 0.0, %v205
  %207 = vmatmul.f32.gmra.mxu0 %v133
  %v208 = vpop.f32.mrf.mxu0
  %v209 = vadd.f32 0.0, %v208
  %210 = vdwg.mxu0
  %v211 = vrot.slane %v153, 7
  %v212 = vrot.slane %v156, 7
  %v213 = vrot.slane %v159, 7
  %v214 = vrot.slane %v162, 7
  %vm215 = vcmp.lt.s32.totalorder %v50, 1
  %v216 = vsel %vm215, %v213, %v214
  %v217 = vsel %vm215, %v212, %v213
  %v218 = vsel %vm215, %v211, %v212
  %v219 = vsel %vm215, %v214, %v211
  %v220 = vsel %vm102, %v219, 0.0
  %v221 = vsel %vm103, %v218, 0.0
  %v222 = vsel %vm104, %v217, 0.0
  %v223 = vsel %vm105, %v216, 0.0
  %v224 = vrot.slane %v200, 1
  %v225 = vrot.slane %v203, 1
  %v226 = vrot.slane %v206, 1
  %v227 = vrot.slane %v209, 1
  %vm228 = vcmp.lt.s32.totalorder %v50, 7
  %v229 = vsel %vm228, %v226, %v227
  %v230 = vsel %vm228, %v225, %v226
  %v231 = vsel %vm228, %v224, %v225
  %v232 = vsel %vm228, %v227, %v224
  %v233 = vsel %vm106, %v231, 0.0
  %v234 = vsel %vm107, %v230, 0.0
  %v235 = vsel %vm108, %v229, 0.0
  %v236 = vsel %vm109, %v232, 0.0
  %237 = vmatpush.msra.mxu0 0.0
  %238 = vmatpush.msra.mxu0 0.0
  %239 = vmatpush.msra.mxu0 0.0
  %240 = vmatpush.msra.mxu0 0.0
  %241 = vmatpush.msra.mxu0 0.0
  %242 = vmatpush.msra.mxu0 0.0
  %243 = vmatpush.msra.mxu0 0.0
  %244 = vmatpush.msra.mxu0 0.0
  %245 = vmatpush.msra.mxu0 %v172
  %246 = vmatpush.msra.mxu0 %v171
  %247 = vmatpush.msra.mxu0 %v170
  %248 = vmatpush.msra.mxu0 %v169
  %249 = vmatpush.msra.mxu0 %v168
  %250 = vmatpush.msra.mxu0 %v167
  %251 = vmatpush.msra.mxu0 %v166
  %252 = vmatpush.msra.mxu0 %v165
  %253 = vmatmul.f32.gmra.mxu0 %v124
  %v254 = vpop.f32.mrf.mxu0
  %v255 = vadd.f32 %v220, %v254
  %256 = vmatmul.f32.gmra.mxu0 %v127
  %v257 = vpop.f32.mrf.mxu0
  %v258 = vadd.f32 %v221, %v257
  %259 = vmatmul.f32.gmra.mxu0 %v130
  %v260 = vpop.f32.mrf.mxu0
  %v261 = vadd.f32 %v222, %v260
  %262 = vmatmul.f32.gmra.mxu0 %v133
  %v263 = vpop.f32.mrf.mxu0
  %v264 = vadd.f32 %v223, %v263
  %265 = vdwg.mxu0
  %v266 = vadd.f32 %v255, %v233
  %v267 = vadd.f32 %v258, %v234
  %v268 = vadd.f32 %v261, %v235
  %v269 = vadd.f32 %v264, %v236
  %v270 = vld [vmem:[%s3] sm:$0x1]
  %v271 = vld [vmem:[%s4] sm:$0x1]
  %v272 = vadd.f32 %v266, %v267
  %v273 = vadd.f32 %v272, %v268
  %v274 = vadd.f32 %v273, %v269
  %v275 = vrot.slane %v274, 4
  %v276 = vadd.f32 %v274, %v275
  %v277 = vrot.slane %v276, 2
  %v278 = vadd.f32 %v276, %v277
  %v279 = vrot.slane %v278, 1
  %v280 = vadd.f32 %v278, %v279
  %v281 = vmul.f32 %v266, %v266
  %v282 = vmul.f32 %v267, %v267
  %v283 = vmul.f32 %v268, %v268
  %v284 = vmul.f32 %v269, %v269
  %v285 = vadd.f32 %v281, %v282
  %v286 = vadd.f32 %v285, %v283
  %v287 = vadd.f32 %v286, %v284
  %v288 = vrot.slane %v287, 4
  %v289 = vadd.f32 %v287, %v288
  %v290 = vrot.slane %v289, 2
  %v291 = vadd.f32 %v289, %v290
  %v292 = vrot.slane %v291, 1
  %v293 = vadd.f32 %v291, %v292
  %294 = vmatpush.msra.mxu0 %v47
  %295 = vmatpush.msra.mxu0 %v46
  %296 = vmatpush.msra.mxu0 %v45
  %297 = vmatpush.msra.mxu0 %v44
  %298 = vmatpush.msra.mxu0 %v43
  %299 = vmatpush.msra.mxu0 %v42
  %300 = vmatpush.msra.mxu0 %v41
  %301 = vmatpush.msra.mxu0 %v40
  %302 = vmatpush.msra.mxu0 %v39
  %303 = vmatpush.msra.mxu0 %v38
  %304 = vmatpush.msra.mxu0 %v37
  %305 = vmatpush.msra.mxu0 %v36
  %306 = vmatpush.msra.mxu0 %v35
  %307 = vmatpush.msra.mxu0 %v34
  %308 = vmatpush.msra.mxu0 %v33
  %309 = vmatpush.msra.mxu0 %v32
  %310 = vmatmul.f32.gmra.mxu0 %v280
  %v311 = vpop.f32.mrf.mxu0
  %v312 = vadd.f32 0.0, %v311
  %313 = vdwg.mxu0
  %314 = vmatpush.msra.mxu0 %v47
  %315 = vmatpush.msra.mxu0 %v46
  %316 = vmatpush.msra.mxu0 %v45
  %317 = vmatpush.msra.mxu0 %v44
  %318 = vmatpush.msra.mxu0 %v43
  %319 = vmatpush.msra.mxu0 %v42
  %320 = vmatpush.msra.mxu0 %v41
  %321 = vmatpush.msra.mxu0 %v40
  %322 = vmatpush.msra.mxu0 %v39
  %323 = vmatpush.msra.mxu0 %v38
  %324 = vmatpush.msra.mxu0 %v37
  %325 = vmatpush.msra.mxu0 %v36
  %326 = vmatpush.msra.mxu0 %v35
  %327 = vmatpush.msra.mxu0 %v34
  %328 = vmatpush.msra.mxu0 %v33
  %329 = vmatpush.msra.mxu0 %v32
  %330 = vmatmul.f32.gmra.mxu0 %v293
  %v331 = vpop.f32.mrf.mxu0
  %v332 = vadd.f32 0.0, %v331
  %333 = vdwg.mxu0
  %v334 = vrcp.pop 512.0
  %v335 = vmul.f32 512.0, %v334
  %v336 = vsub.f32 1.0, %v335
  %v337 = vmul.f32 %v334, %v336
  %v338 = vadd.f32 %v334, %v337
  %vm339 = vweird.f32 %v334
  %v340 = vsel %vm339, %v334, %v338
  %v341 = vmul.f32 %v312, %v340
  %v342 = vmul.f32 %v332, %v340
  %v343 = vmul.f32 %v341, %v341
  %v344 = vsub.f32 %v342, %v343
  %v345 = vadd.f32 %v344, 1e-05
  %v346 = vrsqrt.pop %v345
  %v347 = vmul.f32 %v346, %v345
  %v348 = vmul.f32 %v347, %v346
  %v349 = vmul.f32 0.5, %v348
  %v350 = vsub.f32 1.5, %v349
  %v351 = vmul.f32 %v346, %v350
  %vm352 = vweird.f32 %v345
  %vm353 = vweird.f32 %v346
  %vm354 = vmor %vm352, %vm353
  %v355 = vsel %vm354, %v346, %v351
  %vm356 = vcmask 64512
  %v358 = vsel %vm356, %v341, 0
  %360 = vmatpush.msra.mxu0 0.0
  %361 = vmatpush.msra.mxu0 0.0
  %362 = vmatpush.msra.mxu0 0.0
  %363 = vmatpush.msra.mxu0 0.0
  %364 = vmatpush.msra.mxu0 0.0
  %365 = vmatpush.msra.mxu0 0.0
  %366 = vmatpush.msra.mxu0 0.0
  %367 = vmatpush.msra.mxu0 0.0
  %368 = vmatpush.msra.mxu0 0.0
  %369 = vmatpush.msra.mxu0 0.0
  %370 = vmatpush.msra.mxu0 0.0
  %371 = vmatpush.msra.mxu0 0.0
  %372 = vmatpush.msra.mxu0 0.0
  %373 = vmatpush.msra.mxu0 0.0
  %374 = vmatpush.msra.mxu0 0.0
  %375 = vmatpush.msra.mxu0 %v48
  %376 = vmatmul.f32.gmra.mxu0 %v358
  %v377 = vpop.f32.mrf.mxu0
  %v378 = vadd.f32 0.0, %v377
  %379 = vdwg.mxu0
  %v381 = vsel %vm356, %v355, 0
  %383 = vmatpush.msra.mxu0 0.0
  %384 = vmatpush.msra.mxu0 0.0
  %385 = vmatpush.msra.mxu0 0.0
  %386 = vmatpush.msra.mxu0 0.0
  %387 = vmatpush.msra.mxu0 0.0
  %388 = vmatpush.msra.mxu0 0.0
  %389 = vmatpush.msra.mxu0 0.0
  %390 = vmatpush.msra.mxu0 0.0
  %391 = vmatpush.msra.mxu0 0.0
  %392 = vmatpush.msra.mxu0 0.0
  %393 = vmatpush.msra.mxu0 0.0
  %394 = vmatpush.msra.mxu0 0.0
  %395 = vmatpush.msra.mxu0 0.0
  %396 = vmatpush.msra.mxu0 0.0
  %397 = vmatpush.msra.mxu0 0.0
  %398 = vmatpush.msra.mxu0 %v48
  %399 = vmatmul.f32.gmra.mxu0 %v381
  %v400 = vpop.f32.mrf.mxu0
  %v401 = vadd.f32 0.0, %v400
  %402 = vdwg.mxu0
  %v403 = vmul.f32 %v401, %v270
  %v404 = vmul.f32 %v378, %v403
  %v405 = vsub.f32 %v271, %v404
  %v406 = vperm.slane %v403, 0
  %v407 = vmul.f32 %v266, %v406
  %v408 = vmul.f32 %v267, %v406
  %v409 = vmul.f32 %v268, %v406
  %v410 = vmul.f32 %v269, %v406
  %v412 = vperm.slane %v405, 0
  %v414 = vadd.f32 %v407, %v412
  %v415 = vadd.f32 %v408, %v412
  %v416 = vadd.f32 %v409, %v412
  %v417 = vadd.f32 %v410, %v412
  %v418 = vmax.f32 %v414, 0.0
  %v419 = vmax.f32 %v415, 0.0
  %v420 = vmax.f32 %v416, 0.0
  %v421 = vmax.f32 %v417, 0.0
  %v422 = vld [vmem:[%s2] sm:$0xff]
  %v423 = vld [vmem:[%s2 + $0x8] sm:$0xff]
  %v424 = vld [vmem:[%s2 + $0x10] sm:$0xff]
  %v425 = vld [vmem:[%s2 + $0x18] sm:$0xff]
  %v426 = vld [vmem:[%s2 + $0x20] sm:$0xff]
  %v427 = vld [vmem:[%s2 + $0x28] sm:$0xff]
  %v428 = vld [vmem:[%s2 + $0x30] sm:$0xff]
  %v429 = vld [vmem:[%s2 + $0x38] sm:$0xff]
  %v430 = vld [vmem:[%s2 + $0x40] sm:$0xff]
  %v431 = vld [vmem:[%s2 + $0x48] sm:$0xff]
  %v432 = vld [vmem:[%s2 + $0x50] sm:$0xff]
  %v433 = vld [vmem:[%s2 + $0x58] sm:$0xff]
  %v434 = vld [vmem:[%s2 + $0x60] sm:$0xff]
  %v435 = vld [vmem:[%s2 + $0x68] sm:$0xff]
  %v436 = vld [vmem:[%s2 + $0x70] sm:$0xff]
  %v437 = vld [vmem:[%s2 + $0x78] sm:$0xff]
  %438 = vmatpush.msra.mxu0 %v437
  %439 = vmatpush.msra.mxu0 %v436
  %440 = vmatpush.msra.mxu0 %v435
  %441 = vmatpush.msra.mxu0 %v434
  %442 = vmatpush.msra.mxu0 %v433
  %443 = vmatpush.msra.mxu0 %v432
  %444 = vmatpush.msra.mxu0 %v431
  %445 = vmatpush.msra.mxu0 %v430
  %446 = vmatpush.msra.mxu0 %v429
  %447 = vmatpush.msra.mxu0 %v428
  %448 = vmatpush.msra.mxu0 %v427
  %449 = vmatpush.msra.mxu0 %v426
  %450 = vmatpush.msra.mxu0 %v425
  %451 = vmatpush.msra.mxu0 %v424
  %452 = vmatpush.msra.mxu0 %v423
  %453 = vmatpush.msra.mxu0 %v422
  %454 = vmatmul.f32.gmra.mxu0 %v418
  %v455 = vpop.f32.mrf.mxu0
  %v456 = vadd.f32 0.0, %v455
  %457 = vmatmul.f32.gmra.mxu0 %v419
  %v458 = vpop.f32.mrf.mxu0
  %v459 = vadd.f32 0.0, %v458
  %460 = vmatmul.f32.gmra.mxu0 %v420
  %v461 = vpop.f32.mrf.mxu0
  %v462 = vadd.f32 0.0, %v461
  %463 = vmatmul.f32.gmra.mxu0 %v421
  %v464 = vpop.f32.mrf.mxu0
  %v465 = vadd.f32 0.0, %v464
  %466 = vdwg.mxu0
  %s467 = scalar_lea.vmem %s2, 128
  %v468 = vld [vmem:[%s467] sm:$0xff]
  %v469 = vld [vmem:[%s467 + $0x8] sm:$0xff]
  %v470 = vld [vmem:[%s467 + $0x10] sm:$0xff]
  %v471 = vld [vmem:[%s467 + $0x18] sm:$0xff]
  %v472 = vld [vmem:[%s467 + $0x20] sm:$0xff]
  %v473 = vld [vmem:[%s467 + $0x28] sm:$0xff]
  %v474 = vld [vmem:[%s467 + $0x30] sm:$0xff]
  %v475 = vld [vmem:[%s467 + $0x38] sm:$0xff]
  %v476 = vld [vmem:[%s467 + $0x40] sm:$0xff]
  %v477 = vld [vmem:[%s467 + $0x48] sm:$0xff]
  %v478 = vld [vmem:[%s467 + $0x50] sm:$0xff]
  %v479 = vld [vmem:[%s467 + $0x58] sm:$0xff]
  %v480 = vld [vmem:[%s467 + $0x60] sm:$0xff]
  %v481 = vld [vmem:[%s467 + $0x68] sm:$0xff]
  %v482 = vld [vmem:[%s467 + $0x70] sm:$0xff]
  %v483 = vld [vmem:[%s467 + $0x78] sm:$0xff]
  %s484 = scalar_lea.vmem %s2, 256
  %v485 = vld [vmem:[%s484] sm:$0xff]
  %v486 = vld [vmem:[%s484 + $0x8] sm:$0xff]
  %v487 = vld [vmem:[%s484 + $0x10] sm:$0xff]
  %v488 = vld [vmem:[%s484 + $0x18] sm:$0xff]
  %v489 = vld [vmem:[%s484 + $0x20] sm:$0xff]
  %v490 = vld [vmem:[%s484 + $0x28] sm:$0xff]
  %v491 = vld [vmem:[%s484 + $0x30] sm:$0xff]
  %v492 = vld [vmem:[%s484 + $0x38] sm:$0xff]
  %v493 = vld [vmem:[%s484 + $0x40] sm:$0xff]
  %v494 = vld [vmem:[%s484 + $0x48] sm:$0xff]
  %v495 = vld [vmem:[%s484 + $0x50] sm:$0xff]
  %v496 = vld [vmem:[%s484 + $0x58] sm:$0xff]
  %v497 = vld [vmem:[%s484 + $0x60] sm:$0xff]
  %v498 = vld [vmem:[%s484 + $0x68] sm:$0xff]
  %v499 = vld [vmem:[%s484 + $0x70] sm:$0xff]
  %v500 = vld [vmem:[%s484 + $0x78] sm:$0xff]
  %501 = vmatpush.msra.mxu0 %v500
  %502 = vmatpush.msra.mxu0 %v499
  %503 = vmatpush.msra.mxu0 %v498
  %504 = vmatpush.msra.mxu0 %v497
  %505 = vmatpush.msra.mxu0 %v496
  %506 = vmatpush.msra.mxu0 %v495
  %507 = vmatpush.msra.mxu0 %v494
  %508 = vmatpush.msra.mxu0 %v493
  %509 = vmatpush.msra.mxu0 %v492
  %510 = vmatpush.msra.mxu0 %v491
  %511 = vmatpush.msra.mxu0 %v490
  %512 = vmatpush.msra.mxu0 %v489
  %513 = vmatpush.msra.mxu0 %v488
  %514 = vmatpush.msra.mxu0 %v487
  %515 = vmatpush.msra.mxu0 %v486
  %516 = vmatpush.msra.mxu0 %v485
  %517 = vmatmul.f32.gmra.mxu0 %v418
  %v518 = vpop.f32.mrf.mxu0
  %v519 = vadd.f32 0.0, %v518
  %520 = vmatmul.f32.gmra.mxu0 %v419
  %v521 = vpop.f32.mrf.mxu0
  %v522 = vadd.f32 0.0, %v521
  %523 = vmatmul.f32.gmra.mxu0 %v420
  %v524 = vpop.f32.mrf.mxu0
  %v525 = vadd.f32 0.0, %v524
  %526 = vmatmul.f32.gmra.mxu0 %v421
  %v527 = vpop.f32.mrf.mxu0
  %v528 = vadd.f32 0.0, %v527
  %529 = vdwg.mxu0
  %v530 = vrot.slane %v456, 7
  %v531 = vrot.slane %v459, 7
  %v532 = vrot.slane %v462, 7
  %v533 = vrot.slane %v465, 7
  %v534 = vsel %vm215, %v532, %v533
  %v535 = vsel %vm215, %v531, %v532
  %v536 = vsel %vm215, %v530, %v531
  %v537 = vsel %vm215, %v533, %v530
  %v538 = vsel %vm102, %v537, 0.0
  %v539 = vsel %vm103, %v536, 0.0
  %v540 = vsel %vm104, %v535, 0.0
  %v541 = vsel %vm105, %v534, 0.0
  %v542 = vrot.slane %v519, 1
  %v543 = vrot.slane %v522, 1
  %v544 = vrot.slane %v525, 1
  %v545 = vrot.slane %v528, 1
  %v546 = vsel %vm228, %v544, %v545
  %v547 = vsel %vm228, %v543, %v544
  %v548 = vsel %vm228, %v542, %v543
  %v549 = vsel %vm228, %v545, %v542
  %v550 = vsel %vm106, %v548, 0.0
  %v551 = vsel %vm107, %v547, 0.0
  %v552 = vsel %vm108, %v546, 0.0
  %v553 = vsel %vm109, %v549, 0.0
  %554 = vmatpush.msra.mxu0 %v483
  %555 = vmatpush.msra.mxu0 %v482
  %556 = vmatpush.msra.mxu0 %v481
  %557 = vmatpush.msra.mxu0 %v480
  %558 = vmatpush.msra.mxu0 %v479
  %559 = vmatpush.msra.mxu0 %v478
  %560 = vmatpush.msra.mxu0 %v477
  %561 = vmatpush.msra.mxu0 %v476
  %562 = vmatpush.msra.mxu0 %v475
  %563 = vmatpush.msra.mxu0 %v474
  %564 = vmatpush.msra.mxu0 %v473
  %565 = vmatpush.msra.mxu0 %v472
  %566 = vmatpush.msra.mxu0 %v471
  %567 = vmatpush.msra.mxu0 %v470
  %568 = vmatpush.msra.mxu0 %v469
  %569 = vmatpush.msra.mxu0 %v468
  %570 = vmatmul.f32.gmra.mxu0 %v418
  %v571 = vpop.f32.mrf.mxu0
  %v572 = vadd.f32 %v538, %v571
  %573 = vmatmul.f32.gmra.mxu0 %v419
  %v574 = vpop.f32.mrf.mxu0
  %v575 = vadd.f32 %v539, %v574
  %576 = vmatmul.f32.gmra.mxu0 %v420
  %v577 = vpop.f32.mrf.mxu0
  %v578 = vadd.f32 %v540, %v577
  %579 = vmatmul.f32.gmra.mxu0 %v421
  %v580 = vpop.f32.mrf.mxu0
  %v581 = vadd.f32 %v541, %v580
  %582 = vdwg.mxu0
  %v583 = vadd.f32 %v572, %v550
  %v584 = vadd.f32 %v575, %v551
  %v585 = vadd.f32 %v578, %v552
  %v586 = vadd.f32 %v581, %v553
  %v587 = vld [vmem:[%s5] sm:$0x1]
  %v588 = vld [vmem:[%s6] sm:$0x1]
  %v589 = vadd.f32 %v583, %v584
  %v590 = vadd.f32 %v589, %v585
  %v591 = vadd.f32 %v590, %v586
  %v592 = vrot.slane %v591, 4
  %v593 = vadd.f32 %v591, %v592
  %v594 = vrot.slane %v593, 2
  %v595 = vadd.f32 %v593, %v594
  %v596 = vrot.slane %v595, 1
  %v597 = vadd.f32 %v595, %v596
  %v598 = vmul.f32 %v583, %v583
  %v599 = vmul.f32 %v584, %v584
  %v600 = vmul.f32 %v585, %v585
  %v601 = vmul.f32 %v586, %v586
  %v602 = vadd.f32 %v598, %v599
  %v603 = vadd.f32 %v602, %v600
  %v604 = vadd.f32 %v603, %v601
  %v605 = vrot.slane %v604, 4
  %v606 = vadd.f32 %v604, %v605
  %v607 = vrot.slane %v606, 2
  %v608 = vadd.f32 %v606, %v607
  %v609 = vrot.slane %v608, 1
  %v610 = vadd.f32 %v608, %v609
  %611 = vmatpush.msra.mxu0 %v47
  %612 = vmatpush.msra.mxu0 %v46
  %613 = vmatpush.msra.mxu0 %v45
  %614 = vmatpush.msra.mxu0 %v44
  %615 = vmatpush.msra.mxu0 %v43
  %616 = vmatpush.msra.mxu0 %v42
  %617 = vmatpush.msra.mxu0 %v41
  %618 = vmatpush.msra.mxu0 %v40
  %619 = vmatpush.msra.mxu0 %v39
  %620 = vmatpush.msra.mxu0 %v38
  %621 = vmatpush.msra.mxu0 %v37
  %622 = vmatpush.msra.mxu0 %v36
  %623 = vmatpush.msra.mxu0 %v35
  %624 = vmatpush.msra.mxu0 %v34
  %625 = vmatpush.msra.mxu0 %v33
  %626 = vmatpush.msra.mxu0 %v32
  %627 = vmatmul.f32.gmra.mxu0 %v597
  %v628 = vpop.f32.mrf.mxu0
  %v629 = vadd.f32 0.0, %v628
  %630 = vdwg.mxu0
  %631 = vmatpush.msra.mxu0 %v47
  %632 = vmatpush.msra.mxu0 %v46
  %633 = vmatpush.msra.mxu0 %v45
  %634 = vmatpush.msra.mxu0 %v44
  %635 = vmatpush.msra.mxu0 %v43
  %636 = vmatpush.msra.mxu0 %v42
  %637 = vmatpush.msra.mxu0 %v41
  %638 = vmatpush.msra.mxu0 %v40
  %639 = vmatpush.msra.mxu0 %v39
  %640 = vmatpush.msra.mxu0 %v38
  %641 = vmatpush.msra.mxu0 %v37
  %642 = vmatpush.msra.mxu0 %v36
  %643 = vmatpush.msra.mxu0 %v35
  %644 = vmatpush.msra.mxu0 %v34
  %645 = vmatpush.msra.mxu0 %v33
  %646 = vmatpush.msra.mxu0 %v32
  %647 = vmatmul.f32.gmra.mxu0 %v610
  %v648 = vpop.f32.mrf.mxu0
  %v649 = vadd.f32 0.0, %v648
  %650 = vdwg.mxu0
  %v651 = vmul.f32 %v629, %v340
  %v652 = vmul.f32 %v649, %v340
  %v653 = vmul.f32 %v651, %v651
  %v654 = vsub.f32 %v652, %v653
  %v655 = vadd.f32 %v654, 1e-05
  %v656 = vrsqrt.pop %v655
  %v657 = vmul.f32 %v656, %v655
  %v658 = vmul.f32 %v657, %v656
  %v659 = vmul.f32 0.5, %v658
  %v660 = vsub.f32 1.5, %v659
  %v661 = vmul.f32 %v656, %v660
  %vm662 = vweird.f32 %v655
  %vm663 = vweird.f32 %v656
  %vm664 = vmor %vm662, %vm663
  %v665 = vsel %vm664, %v656, %v661
  %v667 = vsel %vm356, %v651, 0
  %669 = vmatpush.msra.mxu0 0.0
  %670 = vmatpush.msra.mxu0 0.0
  %671 = vmatpush.msra.mxu0 0.0
  %672 = vmatpush.msra.mxu0 0.0
  %673 = vmatpush.msra.mxu0 0.0
  %674 = vmatpush.msra.mxu0 0.0
  %675 = vmatpush.msra.mxu0 0.0
  %676 = vmatpush.msra.mxu0 0.0
  %677 = vmatpush.msra.mxu0 0.0
  %678 = vmatpush.msra.mxu0 0.0
  %679 = vmatpush.msra.mxu0 0.0
  %680 = vmatpush.msra.mxu0 0.0
  %681 = vmatpush.msra.mxu0 0.0
  %682 = vmatpush.msra.mxu0 0.0
  %683 = vmatpush.msra.mxu0 0.0
  %684 = vmatpush.msra.mxu0 %v48
  %685 = vmatmul.f32.gmra.mxu0 %v667
  %v686 = vpop.f32.mrf.mxu0
  %v687 = vadd.f32 0.0, %v686
  %688 = vdwg.mxu0
  %v690 = vsel %vm356, %v665, 0
  %692 = vmatpush.msra.mxu0 0.0
  %693 = vmatpush.msra.mxu0 0.0
  %694 = vmatpush.msra.mxu0 0.0
  %695 = vmatpush.msra.mxu0 0.0
  %696 = vmatpush.msra.mxu0 0.0
  %697 = vmatpush.msra.mxu0 0.0
  %698 = vmatpush.msra.mxu0 0.0
  %699 = vmatpush.msra.mxu0 0.0
  %700 = vmatpush.msra.mxu0 0.0
  %701 = vmatpush.msra.mxu0 0.0
  %702 = vmatpush.msra.mxu0 0.0
  %703 = vmatpush.msra.mxu0 0.0
  %704 = vmatpush.msra.mxu0 0.0
  %705 = vmatpush.msra.mxu0 0.0
  %706 = vmatpush.msra.mxu0 0.0
  %707 = vmatpush.msra.mxu0 %v48
  %708 = vmatmul.f32.gmra.mxu0 %v690
  %v709 = vpop.f32.mrf.mxu0
  %v710 = vadd.f32 0.0, %v709
  %711 = vdwg.mxu0
  %v712 = vmul.f32 %v710, %v587
  %v713 = vmul.f32 %v687, %v712
  %v714 = vsub.f32 %v588, %v713
  %v715 = vperm.slane %v712, 0
  %v716 = vmul.f32 %v583, %v715
  %v717 = vmul.f32 %v584, %v715
  %v718 = vmul.f32 %v585, %v715
  %v719 = vmul.f32 %v586, %v715
  %v721 = vperm.slane %v714, 0
  %v723 = vadd.f32 %v716, %v721
  %v724 = vadd.f32 %v717, %v721
  %v725 = vadd.f32 %v718, %v721
  %v726 = vadd.f32 %v719, %v721
  %v727 = vmax.f32 %v723, 0.0
  %v728 = vmax.f32 %v724, 0.0
  %v729 = vmax.f32 %v725, 0.0
  %v730 = vmax.f32 %v726, 0.0
  %731 = vst [vmem:[%s9] sm:$0xff] %v727
  %732 = vst [vmem:[%s9 + $0x8] sm:$0xff] %v728
  %733 = vst [vmem:[%s9 + $0x10] sm:$0xff] %v729
  %734 = vst [vmem:[%s9 + $0x18] sm:$0xff] %v730
  // Predicated region
  $region38: #{double_conv_forward.1} parent=0 // pred_check
    _
  $region39: #{double_conv_forward.1} parent=0 // pred_check_branch
    %736 = sbr.rel (0) target = $region41
  $region40: #{double_conv_forward.1} parent=0 // pred_region
    _
  $region41: #{double_conv_forward.1} parent=0 // pred_fallthru
    _
  // Predicated region
  $region42: #{double_conv_forward.1} parent=0 // pred_check
    _
  $region43: #{double_conv_forward.1} parent=0 // pred_check_branch
    %738 = sbr.rel (0) target = $region45
  $region44: #{double_conv_forward.1} parent=0 // pred_region
    _
  $region45: #{double_conv_forward.1} parent=0 // pred_fallthru
    _

</llo_original>
